<compile_context>
chip_gen: v6e
topology: v6e:2x2x1
jax: 0.10.0
libtpu: 0.0.40
codegen_flags: <defaults>
</compile_context>

<pallas_src>
import functools

import jax
import jax.numpy as jnp
from jax.experimental import pallas as pl
from jax.experimental.pallas import tpu as pltpu

# Logical sizes of the PyTorch module.
D_IN = 15
H1_REAL, H2_REAL, H3_REAL, N_CLASSES = 64, 100, 150, 2

# Padded (lane/sublane friendly) sizes used inside the kernel.
H1P, H2P, H3P, N_PAD = 64, 128, 256, 128
NEG_BIG = -1e30  # bias for padded class lanes -> exp() underflows to exactly 0 (f32)

DEFAULT_TILE_B = 2048  # batch tile (multiple of 8); per-tile VMEM ~ a few MiB


def _round_up(n, m):
    return ((n + m - 1) // m) * m


def classifier_kernel(x_ref,
                      w1_ref, b1_ref,
                      w2_ref, b2_ref,
                      w3_ref, b3_ref,
                      w4_ref, b4_ref,
                      o_ref):
    # x tile: (TILE_B, 15) f32 -> bf16 for the MXU; accumulate in f32.
    x = x_ref[...].astype(w1_ref.dtype)

    # fc1 + ReLU   (bias-add / ReLU in f32)
    h = jnp.dot(x, w1_ref[...], preferred_element_type=jnp.float32) + b1_ref[...]
    h = jnp.maximum(h, 0.0)

    # fc2 + ReLU
    h = jnp.dot(h.astype(w2_ref.dtype), w2_ref[...],
                preferred_element_type=jnp.float32) + b2_ref[...]
    h = jnp.maximum(h, 0.0)

    # fc3 + ReLU
    h = jnp.dot(h.astype(w3_ref.dtype), w3_ref[...],
                preferred_element_type=jnp.float32) + b3_ref[...]
    h = jnp.maximum(h, 0.0)

    # output layer: padded to 128 lanes; padded lanes carry a -1e30 bias so
    # they contribute exp(...) == 0 to the softmax normalizer (f32 only).
    logits = jnp.dot(h.astype(w4_ref.dtype), w4_ref[...],
                     preferred_element_type=jnp.float32) + b4_ref[...]

    # Numerically-stable log-softmax over the class axis (padded lanes are
    # << the real max, so max/sum equal the 2-class result).
    m = jnp.max(logits, axis=1, keepdims=True)
    shifted = logits - m
    lse = jnp.log(jnp.sum(jnp.exp(shifted), axis=1, keepdims=True))

    # Store only the 2 real classes: (TILE_B, 2) masked store, no padded
    # writeback to HBM.  (Rows of a partial final tile beyond B are never
    # written back; their garbage x rows only affect themselves.)
    o_ref[...] = (shifted - lse)[:, :N_CLASSES].astype(o_ref.dtype)


def prepare_params(params, mxu_dtype=jnp.bfloat16):
    """Pad weights/biases ONCE to lane-friendly shapes; cast weights for the MXU.

    Weights stored as (in, out) so the kernel computes x @ W + b.  Zero padding
    is exact; padded output-class lanes get a -1e30 bias so they drop out of
    the log-softmax.  Call this once and reuse the returned tuple.
    """
    w1 = jnp.zeros((D_IN, H1P), jnp.float32).at[:, :H1_REAL].set(params["w1"])
    b1 = jnp.zeros((1, H1P), jnp.float32).at[:, :H1_REAL].set(params["b1"])

    w2 = jnp.zeros((H1P, H2P), jnp.float32).at[:H1_REAL, :H2_REAL].set(params["w2"])
    b2 = jnp.zeros((1, H2P), jnp.float32).at[:, :H2_REAL].set(params["b2"])

    w3 = jnp.zeros((H2P, H3P), jnp.float32).at[:H2_REAL, :H3_REAL].set(params["w3"])
    b3 = jnp.zeros((1, H3P), jnp.float32).at[:, :H3_REAL].set(params["b3"])

    w4 = jnp.zeros((H3P, N_PAD), jnp.float32).at[:H3_REAL, :N_CLASSES].set(params["w4"])
    b4 = jnp.full((1, N_PAD), NEG_BIG, jnp.float32).at[:, :N_CLASSES].set(params["b4"])

    return (w1.astype(mxu_dtype), b1,
            w2.astype(mxu_dtype), b2,
            w3.astype(mxu_dtype), b3,
            w4.astype(mxu_dtype), b4)


def _choose_tile_b(batch, tile_b):
    """Pick a batch tile: cap at `tile_b`, keep it a multiple of 8, and make
    sure moderate batches produce >= 2 grid steps (v7x has 2 TensorCores)."""
    tile = min(tile_b, _round_up(batch, 8))
    if batch >= 16:
        tile = min(tile, _round_up(pl.cdiv(batch, 2), 8))
    return max(tile, 8)


@functools.partial(jax.jit, static_argnames=("tile_b",))
def _forward_impl(x, w1, b1, w2, b2, w3, b3, w4, b4, *, tile_b):
    B = x.shape[0]
    grid = (pl.cdiv(B, tile_b),)

    # Advisory cost estimate (padded per-call numbers).
    padded_macs = D_IN * H1P + H1P * H2P + H2P * H3P + H3P * N_PAD
    weight_bytes = 2 * padded_macs + 4 * (H1P + H2P + H3P + N_PAD)  # bf16 W + f32 b
    cost = pl.CostEstimate(
        flops=2 * B * padded_macs,
        transcendentals=B * (N_PAD + 1),               # exp per padded lane + log
        bytes_accessed=B * D_IN * 4 + weight_bytes + B * N_CLASSES * 4,
    )

    const = lambda i: (0, 0)  # weights/biases resident in VMEM across tiles

    return pl.pallas_call(
        classifier_kernel,
        out_shape=jax.ShapeDtypeStruct((B, N_CLASSES), jnp.float32),
        grid=grid,
        in_specs=[
            pl.BlockSpec((tile_b, D_IN), lambda i: (i, 0)),   # x: batch-tiled
            pl.BlockSpec((D_IN, H1P), const),
            pl.BlockSpec((1, H1P), const),
            pl.BlockSpec((H1P, H2P), const),
            pl.BlockSpec((1, H2P), const),
            pl.BlockSpec((H2P, H3P), const),
            pl.BlockSpec((1, H3P), const),
            pl.BlockSpec((H3P, N_PAD), const),
            pl.BlockSpec((1, N_PAD), const),
        ],
        # Last dim (2) equals the full array dim -> legal block; masked vst.
        out_specs=pl.BlockSpec((tile_b, N_CLASSES), lambda i: (i, 0)),
        compiler_params=pltpu.CompilerParams(
            dimension_semantics=("parallel",),       # shard tiles across v7x TCs
            vmem_limit_bytes=48 * 1024 * 1024,       # fits v7x's 64 MiB physical VMEM
        ),
        cost_estimate=cost,
    )(x, w1, b1, w2, b2, w3, b3, w4, b4)


def make_classifier(params, *, tile_b=DEFAULT_TILE_B, mxu_dtype=jnp.bfloat16):
    """Prepare padded/cast weights once and return a jitted forward fn."""
    prepared = prepare_params(params, mxu_dtype=mxu_dtype)

    def forward(x):
        tb = _choose_tile_b(x.shape[0], tile_b)
        return _forward_impl(x, *prepared, tile_b=tb)

    return forward


def init_params(key):
    """Deterministic init mimicking PyTorch nn.Linear default (U(+/- 1/sqrt(fan_in)))."""
    dims = [(D_IN, H1_REAL), (H1_REAL, H2_REAL), (H2_REAL, H3_REAL), (H3_REAL, N_CLASSES)]
    params = {}
    for i, (fan_in, fan_out) in enumerate(dims, start=1):
        key, kw, kb = jax.random.split(key, 3)
        bound = 1.0 / jnp.sqrt(jnp.float32(fan_in))
        params[f"w{i}"] = jax.random.uniform(
            kw, (fan_in, fan_out), jnp.float32, minval=-bound, maxval=bound)
        params[f"b{i}"] = jax.random.uniform(
            kb, (1, fan_out), jnp.float32, minval=-bound, maxval=bound)
    return params


def reference_forward(x, params):
    """Pure-JAX f32 reference matching the PyTorch module."""
    h = jnp.maximum(x @ params["w1"] + params["b1"], 0.0)
    h = jnp.maximum(h @ params["w2"] + params["b2"], 0.0)
    h = jnp.maximum(h @ params["w3"] + params["b3"], 0.0)
    logits = h @ params["w4"] + params["b4"]
    return jax.nn.log_softmax(logits, axis=1)


if __name__ == "__main__":
    key = jax.random.PRNGKey(0)
    key, kx = jax.random.split(key)

    B = 24                      # small demo batch; tile_b -> 16, 2 grid steps
    x = jax.random.normal(kx, (B, D_IN), dtype=jnp.float32)
    params = init_params(key)

    forward = make_classifier(params)          # pad/cast weights once, jitted
    out = jax.block_until_ready(forward(x))

    ref = reference_forward(x, params)
    assert out.shape == (B, N_CLASSES), out.shape
    # Kernel uses bf16 MXU inputs (f32 accumulation) -> allow bf16-level error.
    assert jnp.allclose(out, ref, atol=5e-2, rtol=1e-2), "mismatch vs reference"

    print("KERNEL_OK")
</pallas_src>

<mosaic_0001>
module attributes {stable_mosaic.version = 11 : i64} {
  func.func @classifier_kernel(%arg0: i32, %arg1: memref<16x15xf32, #tpu.memory_space<vmem>>, %arg2: memref<15x64xbf16, #tpu.memory_space<vmem>>, %arg3: memref<1x64xf32, #tpu.memory_space<vmem>>, %arg4: memref<64x128xbf16, #tpu.memory_space<vmem>>, %arg5: memref<1x128xf32, #tpu.memory_space<vmem>>, %arg6: memref<128x256xbf16, #tpu.memory_space<vmem>>, %arg7: memref<1x256xf32, #tpu.memory_space<vmem>>, %arg8: memref<256x128xbf16, #tpu.memory_space<vmem>>, %arg9: memref<1x128xf32, #tpu.memory_space<vmem>>, %arg10: memref<16x2xf32, #tpu.memory_space<vmem>>) attributes {dimension_semantics = [#tpu.dimension_semantics<parallel>], iteration_bounds = array<i64: 2>, scalar_prefetch = 0 : i64, scratch_operands = 0 : i64, tpu.core_type = #tpu.core_type<tc>, window_params = [{transform_indices = @transform_0, window_bounds = array<i64: 16, 15>}, {pipeline_mode = #tpu.pipeline_mode<synchronous>, transform_indices = @transform_1, window_bounds = array<i64: 15, 64>}, {pipeline_mode = #tpu.pipeline_mode<synchronous>, transform_indices = @transform_2, window_bounds = array<i64: 1, 64>}, {pipeline_mode = #tpu.pipeline_mode<synchronous>, transform_indices = @transform_3, window_bounds = array<i64: 64, 128>}, {pipeline_mode = #tpu.pipeline_mode<synchronous>, transform_indices = @transform_4, window_bounds = array<i64: 1, 128>}, {pipeline_mode = #tpu.pipeline_mode<synchronous>, transform_indices = @transform_5, window_bounds = array<i64: 128, 256>}, {pipeline_mode = #tpu.pipeline_mode<synchronous>, transform_indices = @transform_6, window_bounds = array<i64: 1, 256>}, {pipeline_mode = #tpu.pipeline_mode<synchronous>, transform_indices = @transform_7, window_bounds = array<i64: 256, 128>}, {pipeline_mode = #tpu.pipeline_mode<synchronous>, transform_indices = @transform_8, window_bounds = array<i64: 1, 128>}, {transform_indices = @transform_9, window_bounds = array<i64: 16, 2>}]} {
    %c0 = arith.constant 0 : index
    %c0_0 = arith.constant 0 : index
    %0 = vector.load %arg1[%c0, %c0_0] : memref<16x15xf32, #tpu.memory_space<vmem>>, vector<16x15xf32>
    %1 = arith.truncf %0 : vector<16x15xf32> to vector<16x15xbf16>
    %c0_1 = arith.constant 0 : index
    %c0_2 = arith.constant 0 : index
    %2 = vector.load %arg2[%c0_1, %c0_2] : memref<15x64xbf16, #tpu.memory_space<vmem>>, vector<15x64xbf16>
    %cst = arith.constant dense<0.000000e+00> : vector<16x64xf32>
    %3 = tpu.matmul %1, %2, %cst {dimension_numbers = #tpu.dot_dimension_numbers<[1], [0], [0], [1], [0, 0, 1, 1], [], []>} : vector<16x15xbf16>, vector<15x64xbf16>, vector<16x64xf32> -> vector<16x64xf32>
    %c0_3 = arith.constant 0 : index
    %c0_4 = arith.constant 0 : index
    %4 = vector.load %arg3[%c0_3, %c0_4] : memref<1x64xf32, #tpu.memory_space<vmem>>, vector<1x64xf32>
    %5 = vector.broadcast %4 : vector<1x64xf32> to vector<16x64xf32>
    %6 = arith.addf %3, %5 : vector<16x64xf32>
    %cst_5 = arith.constant 0.000000e+00 : f32
    %7 = vector.broadcast %cst_5 : f32 to vector<16x64xf32>
    %8 = arith.maximumf %6, %7 : vector<16x64xf32>
    %9 = arith.truncf %8 : vector<16x64xf32> to vector<16x64xbf16>
    %c0_6 = arith.constant 0 : index
    %c0_7 = arith.constant 0 : index
    %10 = vector.load %arg4[%c0_6, %c0_7] : memref<64x128xbf16, #tpu.memory_space<vmem>>, vector<64x128xbf16>
    %cst_8 = arith.constant dense<0.000000e+00> : vector<16x128xf32>
    %11 = tpu.matmul %9, %10, %cst_8 {dimension_numbers = #tpu.dot_dimension_numbers<[1], [0], [0], [1], [0, 0, 1, 1], [], []>} : vector<16x64xbf16>, vector<64x128xbf16>, vector<16x128xf32> -> vector<16x128xf32>
    %c0_9 = arith.constant 0 : index
    %c0_10 = arith.constant 0 : index
    %12 = vector.load %arg5[%c0_9, %c0_10] : memref<1x128xf32, #tpu.memory_space<vmem>>, vector<1x128xf32>
    %13 = vector.broadcast %12 : vector<1x128xf32> to vector<16x128xf32>
    %14 = arith.addf %11, %13 : vector<16x128xf32>
    %cst_11 = arith.constant 0.000000e+00 : f32
    %15 = vector.broadcast %cst_11 : f32 to vector<16x128xf32>
    %16 = arith.maximumf %14, %15 : vector<16x128xf32>
    %17 = arith.truncf %16 : vector<16x128xf32> to vector<16x128xbf16>
    %c0_12 = arith.constant 0 : index
    %c0_13 = arith.constant 0 : index
    %18 = vector.load %arg6[%c0_12, %c0_13] : memref<128x256xbf16, #tpu.memory_space<vmem>>, vector<128x256xbf16>
    %cst_14 = arith.constant dense<0.000000e+00> : vector<16x256xf32>
    %19 = tpu.matmul %17, %18, %cst_14 {dimension_numbers = #tpu.dot_dimension_numbers<[1], [0], [0], [1], [0, 0, 1, 1], [], []>} : vector<16x128xbf16>, vector<128x256xbf16>, vector<16x256xf32> -> vector<16x256xf32>
    %c0_15 = arith.constant 0 : index
    %c0_16 = arith.constant 0 : index
    %20 = vector.load %arg7[%c0_15, %c0_16] : memref<1x256xf32, #tpu.memory_space<vmem>>, vector<1x256xf32>
    %21 = vector.broadcast %20 : vector<1x256xf32> to vector<16x256xf32>
    %22 = arith.addf %19, %21 : vector<16x256xf32>
    %cst_17 = arith.constant 0.000000e+00 : f32
    %23 = vector.broadcast %cst_17 : f32 to vector<16x256xf32>
    %24 = arith.maximumf %22, %23 : vector<16x256xf32>
    %25 = arith.truncf %24 : vector<16x256xf32> to vector<16x256xbf16>
    %c0_18 = arith.constant 0 : index
    %c0_19 = arith.constant 0 : index
    %26 = vector.load %arg8[%c0_18, %c0_19] : memref<256x128xbf16, #tpu.memory_space<vmem>>, vector<256x128xbf16>
    %cst_20 = arith.constant dense<0.000000e+00> : vector<16x128xf32>
    %27 = tpu.matmul %25, %26, %cst_20 {dimension_numbers = #tpu.dot_dimension_numbers<[1], [0], [0], [1], [0, 0, 1, 1], [], []>} : vector<16x256xbf16>, vector<256x128xbf16>, vector<16x128xf32> -> vector<16x128xf32>
    %c0_21 = arith.constant 0 : index
    %c0_22 = arith.constant 0 : index
    %28 = vector.load %arg9[%c0_21, %c0_22] : memref<1x128xf32, #tpu.memory_space<vmem>>, vector<1x128xf32>
    %29 = vector.broadcast %28 : vector<1x128xf32> to vector<16x128xf32>
    %30 = arith.addf %27, %29 : vector<16x128xf32>
    %cst_23 = arith.constant dense<0xFF800000> : vector<16xf32>
    %31 = vector.multi_reduction <maximumf>, %30, %cst_23 [1] : vector<16x128xf32> to vector<16xf32>
    %32 = vector.shape_cast %31 : vector<16xf32> to vector<16x1xf32>
    %33 = vector.broadcast %32 : vector<16x1xf32> to vector<16x128xf32>
    %34 = arith.subf %30, %33 : vector<16x128xf32>
    %35 = math.exp %34 : vector<16x128xf32>
    %cst_24 = arith.constant dense<0.000000e+00> : vector<16xf32>
    %36 = vector.multi_reduction <add>, %35, %cst_24 [1] : vector<16x128xf32> to vector<16xf32>
    %37 = vector.shape_cast %36 : vector<16xf32> to vector<16x1xf32>
    %38 = math.log %37 : vector<16x1xf32>
    %39 = vector.broadcast %38 : vector<16x1xf32> to vector<16x128xf32>
    %40 = arith.subf %34, %39 : vector<16x128xf32>
    %41 = vector.extract_strided_slice %40 {offsets = [0, 0], sizes = [16, 2], strides = [1, 1]} : vector<16x128xf32> to vector<16x2xf32>
    %c0_25 = arith.constant 0 : index
    %c0_26 = arith.constant 0 : index
    %42 = vector.load %arg10[%c0_25, %c0_26] : memref<16x2xf32, #tpu.memory_space<vmem>>, vector<16x2xf32>
    tpu.vector_store %arg10[%c0_25, %c0_26], %41 {strides = array<i32>} : memref<16x2xf32, #tpu.memory_space<vmem>>, vector<16x2xf32>,
    return
  }
  func.func @transform_0(%arg0: i32) -> (i32, i32) {
    %c0_i32 = arith.constant 0 : i32
    %c0_i32_0 = arith.constant 0 : i32
    return %arg0, %c0_i32 : i32, i32
  }
  func.func @transform_1(%arg0: i32) -> (i32, i32) {
    %c0_i32 = arith.constant 0 : i32
    %c0_i32_0 = arith.constant 0 : i32
    %c0_i32_1 = arith.constant 0 : i32
    return %c0_i32, %c0_i32_0 : i32, i32
  }
  func.func @transform_2(%arg0: i32) -> (i32, i32) {
    %c0_i32 = arith.constant 0 : i32
    %c0_i32_0 = arith.constant 0 : i32
    %c0_i32_1 = arith.constant 0 : i32
    return %c0_i32, %c0_i32_0 : i32, i32
  }
  func.func @transform_3(%arg0: i32) -> (i32, i32) {
    %c0_i32 = arith.constant 0 : i32
    %c0_i32_0 = arith.constant 0 : i32
    %c0_i32_1 = arith.constant 0 : i32
    return %c0_i32, %c0_i32_0 : i32, i32
  }
  func.func @transform_4(%arg0: i32) -> (i32, i32) {
    %c0_i32 = arith.constant 0 : i32
    %c0_i32_0 = arith.constant 0 : i32
    %c0_i32_1 = arith.constant 0 : i32
    return %c0_i32, %c0_i32_0 : i32, i32
  }
  func.func @transform_5(%arg0: i32) -> (i32, i32) {
    %c0_i32 = arith.constant 0 : i32
    %c0_i32_0 = arith.constant 0 : i32
    %c0_i32_1 = arith.constant 0 : i32
    return %c0_i32, %c0_i32_0 : i32, i32
  }
  func.func @transform_6(%arg0: i32) -> (i32, i32) {
    %c0_i32 = arith.constant 0 : i32
    %c0_i32_0 = arith.constant 0 : i32
    %c0_i32_1 = arith.constant 0 : i32
    return %c0_i32, %c0_i32_0 : i32, i32
  }
  func.func @transform_7(%arg0: i32) -> (i32, i32) {
    %c0_i32 = arith.constant 0 : i32
    %c0_i32_0 = arith.constant 0 : i32
    %c0_i32_1 = arith.constant 0 : i32
    return %c0_i32, %c0_i32_0 : i32, i32
  }
  func.func @transform_8(%arg0: i32) -> (i32, i32) {
    %c0_i32 = arith.constant 0 : i32
    %c0_i32_0 = arith.constant 0 : i32
    %c0_i32_1 = arith.constant 0 : i32
    return %c0_i32, %c0_i32_0 : i32, i32
  }
  func.func @transform_9(%arg0: i32) -> (i32, i32) {
    %c0_i32 = arith.constant 0 : i32
    %c0_i32_0 = arith.constant 0 : i32
    return %arg0, %c0_i32 : i32, i32
  }
}

</mosaic_0001>

<llo_original>
// kernel: _forward_impl.1
$region0: #{_forward_impl.1}
  #allocation0 [shape = 'u32[]', space=smem, size = 0x4, offset = 0x4, fixed_abs, tag = 'smem constant byte address 0x4 - core index']
  #allocation1 [shape = 'u32[144,128]{1,0:T(1,128)}', space=vmem, size = 0x12000, scoped, tag = 'internal scratch']
  %s0 = inlined_call_operand.vmem [shape: f32[24,15], index: 0, kind: input, shape index: {}]
  %s1 = inlined_call_operand.vmem [shape: bf16[15,64], index: 1, kind: input, shape index: {}]
  %s2 = inlined_call_operand.vmem [shape: f32[1,64], index: 2, kind: input, shape index: {}]
  %s3 = inlined_call_operand.vmem [shape: bf16[64,128], index: 3, kind: input, shape index: {}]
  %s4 = inlined_call_operand.vmem [shape: f32[1,128], index: 4, kind: input, shape index: {}]
  %s5 = inlined_call_operand.hbm [shape: bf16[128,256], index: 5, kind: input, shape index: {}]
  %s6 = inlined_call_operand.vmem [shape: f32[1,256], index: 6, kind: input, shape index: {}]
  %s7 = inlined_call_operand.hbm [shape: bf16[256,128], index: 7, kind: input, shape index: {}]
  %s8 = inlined_call_operand.vmem [shape: f32[1,128], index: 8, kind: input, shape index: {}]
  %s9 = inlined_call_operand.vmem [shape: f32[24,2], index: 9, kind: output, shape index: {}]
  %s10 = sld [smem:[#allocation0]]
  $region125: #{_forward_impl.1} parent=0
    _
  %s12 = ssub.s32 1, %s10
  %s13 = scalar_select 0, %s12, %s10
  $region1: #{_forward_impl.1} parent=0
    #allocation2 [shape = 'u8[65536]{0}', space=vmem, size = 0x10000, scoped, tag = 'input window, operand 5, single buffered']
    #allocation3 [shape = 's32[2]{0}', space=sflag, size = 0x8, scoped, tag = 'scoped memory for _forward_impl.1']
    #allocation4 [shape = 'u8[65536]{0}', space=vmem, size = 0x10000, scoped, tag = 'input window, operand 7, single buffered']
    #allocation5 [shape = 's32[1]{0}', space=sflag, size = 0x4, scoped, tag = 'scoped memory for _forward_impl.1']
    #allocation6 [shape = 'u8[16384]{0}', space=vmem, size = 0x4000, scoped, tag = 'output window, operand 0']
    %14 = vsyncpa [#allocation3], 0
    %15 = vsyncpa [#allocation5], 0
    loop: start=0, step=1, limit=4
    $region2: #{_forward_impl.1} parent=1 // loop_pre_header
      _
    $region3: #{_forward_impl.1} parent=1 // loop_header
      %s17 = sphi 0, %s21
      %p18 = scmp.ge.s32.totalorder %s17, 4
      %s27 = sphi 0, %s29
      %s30 = sphi 0, %s27
      %s31 = sphi 0, %s30
      %s47 = sphi 0, %s31
      %s51 = sphi 0, %s51
      %s53 = sphi 0, %s51
      %s54 = sphi 0, %s53
      %s68 = sphi 0, %s54
      %s72 = sphi 0, %s72
      %s74 = sphi 0, %s72
      %s75 = sphi 0, %s74
      %s89 = sphi 0, %s75
      %s93 = sphi 0, %s93
      %s95 = sphi 0, %s93
      %s96 = sphi 0, %s95
      %s110 = sphi 0, %s96
      %s114 = sphi 0, %s114
      %s116 = sphi 0, %s114
      %s117 = sphi 0, %s116
      %s131 = sphi 0, %s117
      %s135 = sphi 0, %s135
      %s137 = sphi 0, %s135
      %s138 = sphi 0, %s137
      %s152 = sphi 0, %s138
      %s156 = sphi 0, %s156
      %s158 = sphi 0, %s156
      %s159 = sphi 0, %s158
      %s173 = sphi 0, %s159
      %s177 = sphi 0, %s177
      %s179 = sphi 0, %s177
      %s180 = sphi 0, %s179
      %s194 = sphi 0, %s180
      %s198 = sphi 0, %s198
      %s200 = sphi 0, %s198
      %s201 = sphi 0, %s200
      %s215 = sphi 0, %s201
      %s221 = sphi 0, %s223
      %s224 = sphi 0, %s221
      %s225 = sphi 0, %s224
      %s241 = sphi 0, %s225
    $region4: #{_forward_impl.1} parent=1 // loop_header_branch
      %20 = sbr.rel (%p18) target = $region8
    $region5: #{_forward_impl.1} parent=1 // loop_body
      %s22 = ssub.s32 %s17, 1
      %s23 = ssub.s32 %s17, 2
      %s24 = sadd.s32 %s17, 1
      %s25 = ssub.s32 %s17, %s24
      %p26 = scmp.eq.s32.totalorder %s25, 0
      %s28 = sadd.s32 %s27, 1
      %s29 = scalar_select %p26, %s27, %s28
      %p32 = pneg %p26
      %p33 = scmp.eq.s32.totalorder %s17, 1
      %p34 = por %p32, %p33
      %p35 = scmp.ne.s32.totalorder %s27, %s30
      %p36 = scmp.eq.s32.totalorder %s17, 0
      %p37 = por %p35, %p36
      %p38 = scmp.ne.s32.totalorder %s27, %s30
      %p39 = scmp.eq.s32.totalorder %s22, 1
      %p40 = por %p38, %p39
      %p41 = scmp.ne.s32.totalorder %s30, %s31
      %p42 = scmp.eq.s32.totalorder %s22, 0
      %p43 = por %p41, %p42
      %p44 = scmp.ne.s32.totalorder %s30, %s31
      %p45 = scmp.eq.s32.totalorder %s23, 1
      %p46 = por %p44, %p45
      %p48 = scmp.ne.s32.totalorder %s31, %s47
      %p49 = scmp.eq.s32.totalorder %s23, 0
      %p50 = por %p48, %p49
      %s52 = sadd.s32 %s51, 1
      %p55 = scmp.eq.s32.totalorder %s17, 1
      %p56 = scmp.ne.s32.totalorder %s51, %s53
      %p57 = scmp.eq.s32.totalorder %s17, 0
      %p58 = por %p56, %p57
      %p59 = scmp.ne.s32.totalorder %s51, %s53
      %p60 = scmp.eq.s32.totalorder %s22, 1
      %p61 = por %p59, %p60
      %p62 = scmp.ne.s32.totalorder %s53, %s54
      %p63 = scmp.eq.s32.totalorder %s22, 0
      %p64 = por %p62, %p63
      %p65 = scmp.ne.s32.totalorder %s53, %s54
      %p66 = scmp.eq.s32.totalorder %s23, 1
      %p67 = por %p65, %p66
      %p69 = scmp.ne.s32.totalorder %s54, %s68
      %p70 = scmp.eq.s32.totalorder %s23, 0
      %p71 = por %p69, %p70
      %s73 = sadd.s32 %s72, 1
      %p76 = scmp.eq.s32.totalorder %s17, 1
      %p77 = scmp.ne.s32.totalorder %s72, %s74
      %p78 = scmp.eq.s32.totalorder %s17, 0
      %p79 = por %p77, %p78
      %p80 = scmp.ne.s32.totalorder %s72, %s74
      %p81 = scmp.eq.s32.totalorder %s22, 1
      %p82 = por %p80, %p81
      %p83 = scmp.ne.s32.totalorder %s74, %s75
      %p84 = scmp.eq.s32.totalorder %s22, 0
      %p85 = por %p83, %p84
      %p86 = scmp.ne.s32.totalorder %s74, %s75
      %p87 = scmp.eq.s32.totalorder %s23, 1
      %p88 = por %p86, %p87
      %p90 = scmp.ne.s32.totalorder %s75, %s89
      %p91 = scmp.eq.s32.totalorder %s23, 0
      %p92 = por %p90, %p91
      %s94 = sadd.s32 %s93, 1
      %p97 = scmp.eq.s32.totalorder %s17, 1
      %p98 = scmp.ne.s32.totalorder %s93, %s95
      %p99 = scmp.eq.s32.totalorder %s17, 0
      %p100 = por %p98, %p99
      %p101 = scmp.ne.s32.totalorder %s93, %s95
      %p102 = scmp.eq.s32.totalorder %s22, 1
      %p103 = por %p101, %p102
      %p104 = scmp.ne.s32.totalorder %s95, %s96
      %p105 = scmp.eq.s32.totalorder %s22, 0
      %p106 = por %p104, %p105
      %p107 = scmp.ne.s32.totalorder %s95, %s96
      %p108 = scmp.eq.s32.totalorder %s23, 1
      %p109 = por %p107, %p108
      %p111 = scmp.ne.s32.totalorder %s96, %s110
      %p112 = scmp.eq.s32.totalorder %s23, 0
      %p113 = por %p111, %p112
      %s115 = sadd.s32 %s114, 1
      %p118 = scmp.eq.s32.totalorder %s17, 1
      %p119 = scmp.ne.s32.totalorder %s114, %s116
      %p120 = scmp.eq.s32.totalorder %s17, 0
      %p121 = por %p119, %p120
      %p122 = scmp.ne.s32.totalorder %s114, %s116
      %p123 = scmp.eq.s32.totalorder %s22, 1
      %p124 = por %p122, %p123
      %p125 = scmp.ne.s32.totalorder %s116, %s117
      %p126 = scmp.eq.s32.totalorder %s22, 0
      %p127 = por %p125, %p126
      %p128 = scmp.ne.s32.totalorder %s116, %s117
      %p129 = scmp.eq.s32.totalorder %s23, 1
      %p130 = por %p128, %p129
      %p132 = scmp.ne.s32.totalorder %s117, %s131
      %p133 = scmp.eq.s32.totalorder %s23, 0
      %p134 = por %p132, %p133
      %s136 = sadd.s32 %s135, 1
      %p139 = scmp.eq.s32.totalorder %s17, 1
      %p140 = scmp.ne.s32.totalorder %s135, %s137
      %p141 = scmp.eq.s32.totalorder %s17, 0
      %p142 = por %p140, %p141
      %p143 = scmp.ne.s32.totalorder %s135, %s137
      %p144 = scmp.eq.s32.totalorder %s22, 1
      %p145 = por %p143, %p144
      %p146 = scmp.ne.s32.totalorder %s137, %s138
      %p147 = scmp.eq.s32.totalorder %s22, 0
      %p148 = por %p146, %p147
      %p149 = scmp.ne.s32.totalorder %s137, %s138
      %p150 = scmp.eq.s32.totalorder %s23, 1
      %p151 = por %p149, %p150
      %p153 = scmp.ne.s32.totalorder %s138, %s152
      %p154 = scmp.eq.s32.totalorder %s23, 0
      %p155 = por %p153, %p154
      %s157 = sadd.s32 %s156, 1
      %p160 = scmp.eq.s32.totalorder %s17, 1
      %p161 = scmp.ne.s32.totalorder %s156, %s158
      %p162 = scmp.eq.s32.totalorder %s17, 0
      %p163 = por %p161, %p162
      %p164 = scmp.ne.s32.totalorder %s156, %s158
      %p165 = scmp.eq.s32.totalorder %s22, 1
      %p166 = por %p164, %p165
      %p167 = scmp.ne.s32.totalorder %s158, %s159
      %p168 = scmp.eq.s32.totalorder %s22, 0
      %p169 = por %p167, %p168
      %p170 = scmp.ne.s32.totalorder %s158, %s159
      %p171 = scmp.eq.s32.totalorder %s23, 1
      %p172 = por %p170, %p171
      %p174 = scmp.ne.s32.totalorder %s159, %s173
      %p175 = scmp.eq.s32.totalorder %s23, 0
      %p176 = por %p174, %p175
      %s178 = sadd.s32 %s177, 1
      %p181 = scmp.eq.s32.totalorder %s17, 1
      %p182 = scmp.ne.s32.totalorder %s177, %s179
      %p183 = scmp.eq.s32.totalorder %s17, 0
      %p184 = por %p182, %p183
      %p185 = scmp.ne.s32.totalorder %s177, %s179
      %p186 = scmp.eq.s32.totalorder %s22, 1
      %p187 = por %p185, %p186
      %p188 = scmp.ne.s32.totalorder %s179, %s180
      %p189 = scmp.eq.s32.totalorder %s22, 0
      %p190 = por %p188, %p189
      %p191 = scmp.ne.s32.totalorder %s179, %s180
      %p192 = scmp.eq.s32.totalorder %s23, 1
      %p193 = por %p191, %p192
      %p195 = scmp.ne.s32.totalorder %s180, %s194
      %p196 = scmp.eq.s32.totalorder %s23, 0
      %p197 = por %p195, %p196
      %s199 = sadd.s32 %s198, 1
      %p202 = scmp.eq.s32.totalorder %s17, 1
      %p203 = scmp.ne.s32.totalorder %s198, %s200
      %p204 = scmp.eq.s32.totalorder %s17, 0
      %p205 = por %p203, %p204
      %p206 = scmp.ne.s32.totalorder %s198, %s200
      %p207 = scmp.eq.s32.totalorder %s22, 1
      %p208 = por %p206, %p207
      %p209 = scmp.ne.s32.totalorder %s200, %s201
      %p210 = scmp.eq.s32.totalorder %s22, 0
      %p211 = por %p209, %p210
      %p212 = scmp.ne.s32.totalorder %s200, %s201
      %p213 = scmp.eq.s32.totalorder %s23, 1
      %p214 = por %p212, %p213
      %p216 = scmp.ne.s32.totalorder %s201, %s215
      %p217 = scmp.eq.s32.totalorder %s23, 0
      %p218 = por %p216, %p217
      %s219 = ssub.s32 %s17, %s24
      %p220 = scmp.eq.s32.totalorder %s219, 0
      %s222 = sadd.s32 %s221, 1
      %s223 = scalar_select %p220, %s221, %s222
      %p226 = pneg %p220
      %p227 = scmp.eq.s32.totalorder %s17, 1
      %p228 = por %p226, %p227
      %p229 = scmp.ne.s32.totalorder %s221, %s224
      %p230 = scmp.eq.s32.totalorder %s17, 0
      %p231 = por %p229, %p230
      %p232 = scmp.ne.s32.totalorder %s221, %s224
      %p233 = scmp.eq.s32.totalorder %s22, 1
      %p234 = por %p232, %p233
      %p235 = scmp.ne.s32.totalorder %s224, %s225
      %p236 = scmp.eq.s32.totalorder %s22, 0
      %p237 = por %p235, %p236
      %p238 = scmp.ne.s32.totalorder %s224, %s225
      %p239 = scmp.eq.s32.totalorder %s23, 1
      %p240 = por %p238, %p239
      %p242 = scmp.ne.s32.totalorder %s225, %s241
      %p243 = scmp.eq.s32.totalorder %s23, 0
      %p244 = por %p242, %p243
      %p245 = scmp.le.s32.totalorder 1, %s17
      %p246 = scmp.lt.s32.totalorder %s17, 3
      %p247 = pnand %p245, %p246
      %p248 = pneg %p247
      // Predicated region
      $region9: #{_forward_impl.1} parent=5 // pred_check
        _
      $region10: #{_forward_impl.1} parent=5 // pred_check_branch
        %250 = sbr.rel (%p247) target = $region12
      $region11: #{_forward_impl.1} parent=5 // pred_region
        %s251 = ssub.s32 %s17, 1
        // Predicated region
        $region13: #{_forward_impl.1} parent=11 // pred_check
          %p252 = pneg %p64
        $region14: #{_forward_impl.1} parent=11 // pred_check_branch
          %254 = sbr.rel (%p252) target = $region16
        $region15: #{_forward_impl.1} parent=11 // pred_region
          _
        $region16: #{_forward_impl.1} parent=11 // pred_fallthru
          _
        // Predicated region
        $region17: #{_forward_impl.1} parent=11 // pred_check
          %p255 = pneg %p85
        $region18: #{_forward_impl.1} parent=11 // pred_check_branch
          %257 = sbr.rel (%p255) target = $region20
        $region19: #{_forward_impl.1} parent=11 // pred_region
          _
        $region20: #{_forward_impl.1} parent=11 // pred_fallthru
          _
        // Predicated region
        $region21: #{_forward_impl.1} parent=11 // pred_check
          %p258 = pneg %p106
        $region22: #{_forward_impl.1} parent=11 // pred_check_branch
          %260 = sbr.rel (%p258) target = $region24
        $region23: #{_forward_impl.1} parent=11 // pred_region
          _
        $region24: #{_forward_impl.1} parent=11 // pred_fallthru
          _
        // Predicated region
        $region25: #{_forward_impl.1} parent=11 // pred_check
          %p261 = pneg %p127
        $region26: #{_forward_impl.1} parent=11 // pred_check_branch
          %263 = sbr.rel (%p261) target = $region28
        $region27: #{_forward_impl.1} parent=11 // pred_region
          _
        $region28: #{_forward_impl.1} parent=11 // pred_fallthru
          _
        // Predicated region
        $region29: #{_forward_impl.1} parent=11 // pred_check
          %p264 = pneg %p148
        $region30: #{_forward_impl.1} parent=11 // pred_check_branch
          %266 = sbr.rel (%p264) target = $region32
        $region31: #{_forward_impl.1} parent=11 // pred_region
          %s268 = ssub.s32 2048, 2048
          %269 = vsyncadd [#allocation3], %s268
          %s270 = sshll.u32 [#allocation2], 4
          %s271 = int_to_ptr.vmem [resolvable:$true] %s270
          %276 = dma.hbm_to_vmem [thread:$0]  %s5, 2048, %s271, [#allocation3], 128, 128, 8
        $region32: #{_forward_impl.1} parent=11 // pred_fallthru
          _
        // Predicated region
        $region33: #{_forward_impl.1} parent=11 // pred_check
          %p277 = pneg %p169
        $region34: #{_forward_impl.1} parent=11 // pred_check_branch
          %279 = sbr.rel (%p277) target = $region36
        $region35: #{_forward_impl.1} parent=11 // pred_region
          _
        $region36: #{_forward_impl.1} parent=11 // pred_fallthru
          _
        // Predicated region
        $region37: #{_forward_impl.1} parent=11 // pred_check
          %p280 = pneg %p190
        $region38: #{_forward_impl.1} parent=11 // pred_check_branch
          %282 = sbr.rel (%p280) target = $region40
        $region39: #{_forward_impl.1} parent=11 // pred_region
          %s284 = ssub.s32 2048, 2048
          %285 = vsyncadd [#allocation5], %s284
          %s286 = sshll.u32 [#allocation4], 4
          %s287 = int_to_ptr.vmem [resolvable:$true] %s286
          %292 = dma.hbm_to_vmem [thread:$0]  %s7, 2048, %s287, [#allocation5], 64, 64, 4
        $region40: #{_forward_impl.1} parent=11 // pred_fallthru
          _
        // Predicated region
        $region41: #{_forward_impl.1} parent=11 // pred_check
          %p293 = pneg %p211
        $region42: #{_forward_impl.1} parent=11 // pred_check_branch
          %295 = sbr.rel (%p293) target = $region44
        $region43: #{_forward_impl.1} parent=11 // pred_region
          _
        $region44: #{_forward_impl.1} parent=11 // pred_fallthru
          _
      $region12: #{_forward_impl.1} parent=5 // pred_fallthru
        _
      %p296 = scmp.lt.s32.totalorder %s17, 2
      // Predicated region
      $region45: #{_forward_impl.1} parent=5 // pred_check
        %p297 = pneg %p296
      $region46: #{_forward_impl.1} parent=5 // pred_check_branch
        %299 = sbr.rel (%p297) target = $region48
      $region47: #{_forward_impl.1} parent=5 // pred_region
        // Predicated region
        $region49: #{_forward_impl.1} parent=47 // pred_check
          %p300 = pneg %p37
        $region50: #{_forward_impl.1} parent=47 // pred_check_branch
          %302 = sbr.rel (%p300) target = $region52
        $region51: #{_forward_impl.1} parent=47 // pred_region
          %s303 = smul.u32 2, %s17
          %s304 = ssub.s32 3, %s303
          %p305 = scmp.lt.s32.totalorder %s304, 2
          %s306 = scalar_select %p305, %s304, 2
          %s307 = smul.u32 128, %s306
          %p308 = scmp.lt.s32.totalorder %s303, 2
          %s309 = scalar_select %p308, %s303, 2
          %s310 = smul.addr %s309, 8
          %s311 = scalar_lea.vmem %s0, %s310
          %s312 = smul.u32 2, %s17
          %s313 = ssub.s32 3, %s312
          %p314 = scmp.lt.s32.totalorder %s313, 2
          %s315 = scalar_select %p314, %s313, 2
          %s316 = smul.u32 128, %s315
        $region52: #{_forward_impl.1} parent=47 // pred_fallthru
          _
      $region48: #{_forward_impl.1} parent=5 // pred_fallthru
        _
      %p317 = scmp.le.s32.totalorder 1, %s17
      %p318 = scmp.lt.s32.totalorder %s17, 3
      %p319 = pnand %p317, %p318
      %p320 = pneg %p319
      // Predicated region
      $region53: #{_forward_impl.1} parent=5 // pred_check
        _
      $region54: #{_forward_impl.1} parent=5 // pred_check_branch
        %322 = sbr.rel (%p319) target = $region56
      $region55: #{_forward_impl.1} parent=5 // pred_region
        %s323 = ssub.s32 %s17, 1
        // Predicated region
        $region57: #{_forward_impl.1} parent=55 // pred_check
          %p324 = pneg %p148
        $region58: #{_forward_impl.1} parent=55 // pred_check_branch
          %326 = sbr.rel (%p324) target = $region60
        $region59: #{_forward_impl.1} parent=55 // pred_region
          %327 = dma.done [#allocation3], 2048
        $region60: #{_forward_impl.1} parent=55 // pred_fallthru
          _
        // Predicated region
        $region61: #{_forward_impl.1} parent=55 // pred_check
          %p328 = pneg %p190
        $region62: #{_forward_impl.1} parent=55 // pred_check_branch
          %330 = sbr.rel (%p328) target = $region64
        $region63: #{_forward_impl.1} parent=55 // pred_region
          %331 = dma.done [#allocation5], 2048
        $region64: #{_forward_impl.1} parent=55 // pred_fallthru
          _
        %s332 = smul.u32 2, %s22
        %s333 = ssub.s32 3, %s332
        %p334 = scmp.lt.s32.totalorder %s333, 2
        %s335 = scalar_select %p334, %s333, 2
        %s336 = smul.u32 128, %s335
        %p337 = scmp.lt.s32.totalorder %s332, 2
        %s338 = scalar_select %p337, %s332, 2
        %s339 = smul.addr %s338, 8
        %s340 = scalar_lea.vmem %s0, %s339
        %p341 = pneg %p43
        %p342 = pneg %p40
        %p343 = pneg %p64
        %p344 = pneg %p61
        %p345 = pneg %p85
        %p346 = pneg %p82
        %p347 = pneg %p106
        %p348 = pneg %p103
        %p349 = pneg %p127
        %p350 = pneg %p124
        %p351 = pneg %p148
        %p352 = pneg %p145
        %p353 = pneg %p169
        %p354 = pneg %p166
        %p355 = pneg %p190
        %p356 = pneg %p187
        %p357 = pneg %p211
        %p358 = pneg %p208
        %p359 = pneg %p237
        %p360 = pneg %p234
        %s361 = sand.u32 %s224, 1
        %s362 = sand.u32 %s224, 1
        %s363 = smul.addr %s362, 16
        %s364 = scalar_lea.vmem [#allocation6], %s363
        %s365 = smul.u32 2, %s22
        %s366 = ssub.s32 3, %s365
        %p367 = scmp.lt.s32.totalorder %s366, 2
        %s368 = scalar_select %p367, %s366, 2
        %s369 = smul.u32 128, %s368
        %p370 = scmp.lt.s32.totalorder %s365, 2
        %s371 = scalar_select %p370, %s365, 2
        %s372 = smul.addr %s371, 8
        %s373 = scalar_lea.vmem %s0, %s372
        %s374 = smul.u32 2, %s22
        %s375 = ssub.s32 3, %s374
        %p376 = scmp.lt.s32.totalorder %s375, 2
        %s377 = scalar_select %p376, %s375, 2
        %s378 = smul.u32 128, %s377
        %s379 = smul.u32 2, %s22
        %s380 = ssub.s32 3, %s379
        %p381 = scmp.lt.s32.totalorder %s380, 2
        %s382 = scalar_select %p381, %s380, 2
        %s383 = smul.u32 128, %s382
        %v385 = vld [vmem:[%s373] sm:$0xff]
        %v386 = vld [vmem:[%s373 + $0x8] sm:$0xff]
        %v387 = vpack.c.bf16 %v386, %v385
        %v388 = vld [vmem:[%s1] sm:$0xf]
        %v389 = vld [vmem:[%s1 + $0x4] sm:$0xf]
        %v390 = vld [vmem:[%s2] sm:$0x1]
        %v392 = vlaneseq
        %v393 = vshrl.u32 %v392, 7
        %v394 = vsub.s32 0, %v393
        %v395 = vrot.slane %v390, %v394
        %v399 = vunpack.c.l.b16 %v388
        %v400 = vunpack.c.l.b16 %v389
        %v401 = vpack.c.b16 %v400, %v399
        %vm402 = vcmask 121856
        %v404 = vsel %vm402, %v387, 0
        %vm406 = vcmask 1046528
        %vm407 = vcmask 1047552
        %v408 = vsel %vm406, 4294967295, 65535
        %v409 = vsel %vm407, %v408, 0
        %v411 = vand.u32 %v401, %v409
        %413 = vmatprep.subr.bf16.mxu0 0
        %414 = vmatpush1.bf16.msra.mxu0 0
        %415 = vmatprep.subr.bf16.mxu0 0
        %416 = vmatpush1.bf16.msra.mxu0 0
        %417 = vmatprep.subr.bf16.mxu0 0
        %418 = vmatpush1.bf16.msra.mxu0 0
        %419 = vmatprep.subr.bf16.mxu0 0
        %420 = vmatpush1.bf16.msra.mxu0 0
        %421 = vmatprep.subr.bf16.mxu0 0
        %422 = vmatpush1.bf16.msra.mxu0 0
        %423 = vmatprep.subr.bf16.mxu0 0
        %424 = vmatpush1.bf16.msra.mxu0 0
        %425 = vmatprep.subr.bf16.mxu0 0
        %426 = vmatpush1.bf16.msra.mxu0 0
        %427 = vmatprep.subr.bf16.mxu0 0
        %428 = vmatpush1.bf16.msra.mxu0 %v411
        %429 = vmatprep.subr.bf16.mxu0 0
        %430 = vmatpush2.bf16.msra.mxu0 0
        %431 = vmatprep.subr.bf16.mxu0 0
        %432 = vmatpush2.bf16.msra.mxu0 0
        %433 = vmatprep.subr.bf16.mxu0 0
        %434 = vmatpush2.bf16.msra.mxu0 0
        %435 = vmatprep.subr.bf16.mxu0 0
        %436 = vmatpush2.bf16.msra.mxu0 0
        %437 = vmatprep.subr.bf16.mxu0 0
        %438 = vmatpush2.bf16.msra.mxu0 0
        %439 = vmatprep.subr.bf16.mxu0 0
        %440 = vmatpush2.bf16.msra.mxu0 0
        %441 = vmatprep.subr.bf16.mxu0 0
        %442 = vmatpush2.bf16.msra.mxu0 0
        %443 = vmatprep.subr.bf16.mxu0 0
        %444 = vmatpush2.bf16.msra.mxu0 0
        %445 = vmatprep.mubr.bf16.mxu0 0
        %446 = vmatmul.mubr.bf16.gmra.mxu0 %v404
        %v447 = vpop.f32.mrf.mxu0
        %v448 = vadd.f32 %v395, %v447
        %v449 = vpop.f32.mrf.mxu0
        %v450 = vpop.f32.mrf.mxu0
        %v451 = vadd.f32 %v395, %v450
        %v452 = vpop.f32.mrf.mxu0
        %453 = vdwg.mxu0
        %v454 = vmax.f32 %v448, 0.0
        %v455 = vmax.f32 %v451, 0.0
        %v456 = vpack.c.bf16 %v455, %v454
        %v457 = vld [vmem:[%s3] sm:$0xf]
        %v458 = vld [vmem:[%s3 + $0x4] sm:$0xf]
        %v459 = vld [vmem:[%s3 + $0x8] sm:$0xf]
        %v460 = vld [vmem:[%s3 + $0xc] sm:$0xf]
        %v461 = vld [vmem:[%s3 + $0x10] sm:$0xf]
        %v462 = vld [vmem:[%s3 + $0x14] sm:$0xf]
        %v463 = vld [vmem:[%s3 + $0x18] sm:$0xf]
        %v464 = vld [vmem:[%s3 + $0x1c] sm:$0xf]
        %v465 = vld [vmem:[%s4] sm:$0x1]
        %v467 = vlaneseq
        %v468 = vshrl.u32 %v467, 7
        %v469 = vsub.s32 0, %v468
        %v470 = vrot.slane %v465, %v469
        %v480 = vunpack.c.l.b16 %v457
        %v481 = vunpack.c.l.b16 %v458
        %v482 = vunpack.c.l.b16 %v459
        %v483 = vunpack.c.l.b16 %v460
        %v484 = vunpack.c.l.b16 %v461
        %v485 = vunpack.c.l.b16 %v462
        %v486 = vunpack.c.l.b16 %v463
        %v487 = vunpack.c.l.b16 %v464
        %v488 = vpack.c.b16 %v481, %v480
        %v489 = vpack.c.b16 %v483, %v482
        %v490 = vpack.c.b16 %v485, %v484
        %v491 = vpack.c.b16 %v487, %v486
        %vm496 = vcmask 523264
        %v498 = vsel %vm496, %v456, 0
        %500 = vmatprep.subr.bf16.mxu0 0
        %501 = vmatpush1.bf16.msra.mxu0 0
        %502 = vmatprep.subr.bf16.mxu0 0
        %503 = vmatpush1.bf16.msra.mxu0 0
        %504 = vmatprep.subr.bf16.mxu0 0
        %505 = vmatpush1.bf16.msra.mxu0 0
        %506 = vmatprep.subr.bf16.mxu0 0
        %507 = vmatpush1.bf16.msra.mxu0 0
        %508 = vmatprep.subr.bf16.mxu0 0
        %509 = vmatpush1.bf16.msra.mxu0 %v491
        %510 = vmatprep.subr.bf16.mxu0 0
        %511 = vmatpush1.bf16.msra.mxu0 %v490
        %512 = vmatprep.subr.bf16.mxu0 0
        %513 = vmatpush1.bf16.msra.mxu0 %v489
        %514 = vmatprep.subr.bf16.mxu0 0
        %515 = vmatpush1.bf16.msra.mxu0 %v488
        %516 = vmatprep.subr.bf16.mxu0 0
        %517 = vmatpush2.bf16.msra.mxu0 0
        %518 = vmatprep.subr.bf16.mxu0 0
        %519 = vmatpush2.bf16.msra.mxu0 0
        %520 = vmatprep.subr.bf16.mxu0 0
        %521 = vmatpush2.bf16.msra.mxu0 0
        %522 = vmatprep.subr.bf16.mxu0 0
        %523 = vmatpush2.bf16.msra.mxu0 0
        %524 = vmatprep.subr.bf16.mxu0 0
        %525 = vmatpush2.bf16.msra.mxu0 0
        %526 = vmatprep.subr.bf16.mxu0 0
        %527 = vmatpush2.bf16.msra.mxu0 0
        %528 = vmatprep.subr.bf16.mxu0 0
        %529 = vmatpush2.bf16.msra.mxu0 0
        %530 = vmatprep.subr.bf16.mxu0 0
        %531 = vmatpush2.bf16.msra.mxu0 0
        %532 = vmatprep.mubr.bf16.mxu0 0
        %533 = vmatmul.mubr.bf16.gmra.mxu0 %v498
        %v534 = vpop.f32.mrf.mxu0
        %v535 = vadd.f32 %v470, %v534
        %v536 = vpop.f32.mrf.mxu0
        %v537 = vpop.f32.mrf.mxu0
        %v538 = vadd.f32 %v470, %v537
        %v539 = vpop.f32.mrf.mxu0
        %540 = vdwg.mxu0
        %v541 = vmax.f32 %v535, 0.0
        %v542 = vmax.f32 %v538, 0.0
        %v543 = vpack.c.bf16 %v542, %v541
        %v544 = vld [vmem:[#allocation2] sm:$0xff]
        %v545 = vld [vmem:[#allocation2 + $0x8] sm:$0xff]
        %v546 = vld [vmem:[#allocation2 + $0x10] sm:$0xff]
        %v547 = vld [vmem:[#allocation2 + $0x18] sm:$0xff]
        %v548 = vld [vmem:[#allocation2 + $0x20] sm:$0xff]
        %v549 = vld [vmem:[#allocation2 + $0x28] sm:$0xff]
        %v550 = vld [vmem:[#allocation2 + $0x30] sm:$0xff]
        %v551 = vld [vmem:[#allocation2 + $0x38] sm:$0xff]
        %v552 = vld [vmem:[#allocation2 + $0x40] sm:$0xff]
        %v553 = vld [vmem:[#allocation2 + $0x48] sm:$0xff]
        %v554 = vld [vmem:[#allocation2 + $0x50] sm:$0xff]
        %v555 = vld [vmem:[#allocation2 + $0x58] sm:$0xff]
        %v556 = vld [vmem:[#allocation2 + $0x60] sm:$0xff]
        %v557 = vld [vmem:[#allocation2 + $0x68] sm:$0xff]
        %v558 = vld [vmem:[#allocation2 + $0x70] sm:$0xff]
        %v559 = vld [vmem:[#allocation2 + $0x78] sm:$0xff]
        %v560 = vld [vmem:[%s6] sm:$0x3]
        %v562 = vlaneseq
        %v563 = vshrl.u32 %v562, 7
        %v564 = vsub.s32 0, %v563
        %v565 = vrot.slane %v560, %v564
        %v566 = vlaneseq
        %v567 = vshrl.u32 %v566, 7
        %v568 = vsub.s32 1, %v567
        %v569 = vrot.slane %v560, %v568
        %v588 = vunpack.c.l.b16 %v544
        %v589 = vunpack.c.h.b16 %v544
        %v590 = vunpack.c.l.b16 %v545
        %v591 = vunpack.c.h.b16 %v545
        %v592 = vunpack.c.l.b16 %v546
        %v593 = vunpack.c.h.b16 %v546
        %v594 = vunpack.c.l.b16 %v547
        %v595 = vunpack.c.h.b16 %v547
        %v596 = vunpack.c.l.b16 %v548
        %v597 = vunpack.c.h.b16 %v548
        %v598 = vunpack.c.l.b16 %v549
        %v599 = vunpack.c.h.b16 %v549
        %v600 = vunpack.c.l.b16 %v550
        %v601 = vunpack.c.h.b16 %v550
        %v602 = vunpack.c.l.b16 %v551
        %v603 = vunpack.c.h.b16 %v551
        %v604 = vunpack.c.l.b16 %v552
        %v605 = vunpack.c.h.b16 %v552
        %v606 = vunpack.c.l.b16 %v553
        %v607 = vunpack.c.h.b16 %v553
        %v608 = vunpack.c.l.b16 %v554
        %v609 = vunpack.c.h.b16 %v554
        %v610 = vunpack.c.l.b16 %v555
        %v611 = vunpack.c.h.b16 %v555
        %v612 = vunpack.c.l.b16 %v556
        %v613 = vunpack.c.h.b16 %v556
        %v614 = vunpack.c.l.b16 %v557
        %v615 = vunpack.c.h.b16 %v557
        %v616 = vunpack.c.l.b16 %v558
        %v617 = vunpack.c.h.b16 %v558
        %v618 = vunpack.c.l.b16 %v559
        %v619 = vunpack.c.h.b16 %v559
        %v620 = vpack.c.b16 %v590, %v588
        %v621 = vpack.c.b16 %v591, %v589
        %v622 = vpack.c.b16 %v594, %v592
        %v623 = vpack.c.b16 %v595, %v593
        %v624 = vpack.c.b16 %v598, %v596
        %v625 = vpack.c.b16 %v599, %v597
        %v626 = vpack.c.b16 %v602, %v600
        %v627 = vpack.c.b16 %v603, %v601
        %v628 = vpack.c.b16 %v606, %v604
        %v629 = vpack.c.b16 %v607, %v605
        %v630 = vpack.c.b16 %v610, %v608
        %v631 = vpack.c.b16 %v611, %v609
        %v632 = vpack.c.b16 %v614, %v612
        %v633 = vpack.c.b16 %v615, %v613
        %v634 = vpack.c.b16 %v618, %v616
        %v635 = vpack.c.b16 %v619, %v617
        %652 = vmatprep.subr.bf16.mxu0 %v635
        %653 = vmatpush1.bf16.msra.mxu0 %v634
        %654 = vmatprep.subr.bf16.mxu0 %v633
        %655 = vmatpush1.bf16.msra.mxu0 %v632
        %656 = vmatprep.subr.bf16.mxu0 %v631
        %657 = vmatpush1.bf16.msra.mxu0 %v630
        %658 = vmatprep.subr.bf16.mxu0 %v629
        %659 = vmatpush1.bf16.msra.mxu0 %v628
        %660 = vmatprep.subr.bf16.mxu0 %v627
        %661 = vmatpush1.bf16.msra.mxu0 %v626
        %662 = vmatprep.subr.bf16.mxu0 %v625
        %663 = vmatpush1.bf16.msra.mxu0 %v624
        %664 = vmatprep.subr.bf16.mxu0 %v623
        %665 = vmatpush1.bf16.msra.mxu0 %v622
        %666 = vmatprep.subr.bf16.mxu0 %v621
        %667 = vmatpush1.bf16.msra.mxu0 %v620
        %668 = vmatprep.subr.bf16.mxu0 0
        %669 = vmatpush2.bf16.msra.mxu0 0
        %670 = vmatprep.subr.bf16.mxu0 0
        %671 = vmatpush2.bf16.msra.mxu0 0
        %672 = vmatprep.subr.bf16.mxu0 0
        %673 = vmatpush2.bf16.msra.mxu0 0
        %674 = vmatprep.subr.bf16.mxu0 0
        %675 = vmatpush2.bf16.msra.mxu0 0
        %676 = vmatprep.subr.bf16.mxu0 0
        %677 = vmatpush2.bf16.msra.mxu0 0
        %678 = vmatprep.subr.bf16.mxu0 0
        %679 = vmatpush2.bf16.msra.mxu0 0
        %680 = vmatprep.subr.bf16.mxu0 0
        %681 = vmatpush2.bf16.msra.mxu0 0
        %682 = vmatprep.subr.bf16.mxu0 0
        %683 = vmatpush2.bf16.msra.mxu0 0
        %684 = vmatprep.mubr.bf16.mxu0 0
        %685 = vmatmul.mubr.bf16.gmra.mxu0 %v543
        %v686 = vpop.f32.mrf.mxu0
        %v687 = vadd.f32 %v565, %v686
        %v688 = vpop.f32.mrf.mxu0
        %v689 = vadd.f32 %v569, %v688
        %v690 = vpop.f32.mrf.mxu0
        %v691 = vadd.f32 %v565, %v690
        %v692 = vpop.f32.mrf.mxu0
        %v693 = vadd.f32 %v569, %v692
        %694 = vdwg.mxu0
        %v695 = vmax.f32 %v687, 0.0
        %v696 = vmax.f32 %v689, 0.0
        %v697 = vmax.f32 %v691, 0.0
        %v698 = vmax.f32 %v693, 0.0
        %v699 = vpack.c.bf16 %v697, %v695
        %v700 = vpack.c.bf16 %v698, %v696
        %v701 = vld [vmem:[#allocation4] sm:$0xf]
        %v702 = vld [vmem:[#allocation4 + $0x4] sm:$0xf]
        %v703 = vld [vmem:[#allocation4 + $0x8] sm:$0xf]
        %v704 = vld [vmem:[#allocation4 + $0xc] sm:$0xf]
        %v705 = vld [vmem:[#allocation4 + $0x10] sm:$0xf]
        %v706 = vld [vmem:[#allocation4 + $0x14] sm:$0xf]
        %v707 = vld [vmem:[#allocation4 + $0x18] sm:$0xf]
        %v708 = vld [vmem:[#allocation4 + $0x1c] sm:$0xf]
        %v709 = vld [vmem:[#allocation4 + $0x20] sm:$0xf]
        %v710 = vld [vmem:[#allocation4 + $0x24] sm:$0xf]
        %v711 = vld [vmem:[#allocation4 + $0x28] sm:$0xf]
        %v712 = vld [vmem:[#allocation4 + $0x2c] sm:$0xf]
        %v713 = vld [vmem:[#allocation4 + $0x30] sm:$0xf]
        %v714 = vld [vmem:[#allocation4 + $0x34] sm:$0xf]
        %v715 = vld [vmem:[#allocation4 + $0x38] sm:$0xf]
        %v716 = vld [vmem:[#allocation4 + $0x3c] sm:$0xf]
        %v717 = vld [vmem:[#allocation4 + $0x40] sm:$0xf]
        %v718 = vld [vmem:[#allocation4 + $0x44] sm:$0xf]
        %v719 = vld [vmem:[#allocation4 + $0x48] sm:$0xf]
        %v720 = vld [vmem:[#allocation4 + $0x4c] sm:$0xf]
        %v721 = vld [vmem:[#allocation4 + $0x50] sm:$0xf]
        %v722 = vld [vmem:[#allocation4 + $0x54] sm:$0xf]
        %v723 = vld [vmem:[#allocation4 + $0x58] sm:$0xf]
        %v724 = vld [vmem:[#allocation4 + $0x5c] sm:$0xf]
        %v725 = vld [vmem:[#allocation4 + $0x60] sm:$0xf]
        %v726 = vld [vmem:[#allocation4 + $0x64] sm:$0xf]
        %v727 = vld [vmem:[#allocation4 + $0x68] sm:$0xf]
        %v728 = vld [vmem:[#allocation4 + $0x6c] sm:$0xf]
        %v729 = vld [vmem:[#allocation4 + $0x70] sm:$0xf]
        %v730 = vld [vmem:[#allocation4 + $0x74] sm:$0xf]
        %v731 = vld [vmem:[#allocation4 + $0x78] sm:$0xf]
        %v732 = vld [vmem:[#allocation4 + $0x7c] sm:$0xf]
        %v733 = vld [vmem:[%s8] sm:$0x1]
        %v735 = vlaneseq
        %v736 = vshrl.u32 %v735, 7
        %v737 = vsub.s32 0, %v736
        %v738 = vrot.slane %v733, %v737
        %v772 = vunpack.c.l.b16 %v701
        %v773 = vunpack.c.l.b16 %v702
        %v774 = vunpack.c.l.b16 %v703
        %v775 = vunpack.c.l.b16 %v704
        %v776 = vunpack.c.l.b16 %v705
        %v777 = vunpack.c.l.b16 %v706
        %v778 = vunpack.c.l.b16 %v707
        %v779 = vunpack.c.l.b16 %v708
        %v780 = vunpack.c.l.b16 %v709
        %v781 = vunpack.c.l.b16 %v710
        %v782 = vunpack.c.l.b16 %v711
        %v783 = vunpack.c.l.b16 %v712
        %v784 = vunpack.c.l.b16 %v713
        %v785 = vunpack.c.l.b16 %v714
        %v786 = vunpack.c.l.b16 %v715
        %v787 = vunpack.c.l.b16 %v716
        %v788 = vunpack.c.l.b16 %v717
        %v789 = vunpack.c.l.b16 %v718
        %v790 = vunpack.c.l.b16 %v719
        %v791 = vunpack.c.l.b16 %v720
        %v792 = vunpack.c.l.b16 %v721
        %v793 = vunpack.c.l.b16 %v722
        %v794 = vunpack.c.l.b16 %v723
        %v795 = vunpack.c.l.b16 %v724
        %v796 = vunpack.c.l.b16 %v725
        %v797 = vunpack.c.l.b16 %v726
        %v798 = vunpack.c.l.b16 %v727
        %v799 = vunpack.c.l.b16 %v728
        %v800 = vunpack.c.l.b16 %v729
        %v801 = vunpack.c.l.b16 %v730
        %v802 = vunpack.c.l.b16 %v731
        %v803 = vunpack.c.l.b16 %v732
        %v804 = vpack.c.b16 %v773, %v772
        %v805 = vpack.c.b16 %v775, %v774
        %v806 = vpack.c.b16 %v777, %v776
        %v807 = vpack.c.b16 %v779, %v778
        %v808 = vpack.c.b16 %v781, %v780
        %v809 = vpack.c.b16 %v783, %v782
        %v810 = vpack.c.b16 %v785, %v784
        %v811 = vpack.c.b16 %v787, %v786
        %v812 = vpack.c.b16 %v789, %v788
        %v813 = vpack.c.b16 %v791, %v790
        %v814 = vpack.c.b16 %v793, %v792
        %v815 = vpack.c.b16 %v795, %v794
        %v816 = vpack.c.b16 %v797, %v796
        %v817 = vpack.c.b16 %v799, %v798
        %v818 = vpack.c.b16 %v801, %v800
        %v819 = vpack.c.b16 %v803, %v802
        %836 = vmatprep.subr.bf16.mxu0 0
        %837 = vmatpush1.bf16.msra.mxu0 %v811
        %838 = vmatprep.subr.bf16.mxu0 0
        %839 = vmatpush1.bf16.msra.mxu0 %v810
        %840 = vmatprep.subr.bf16.mxu0 0
        %841 = vmatpush1.bf16.msra.mxu0 %v809
        %842 = vmatprep.subr.bf16.mxu0 0
        %843 = vmatpush1.bf16.msra.mxu0 %v808
        %844 = vmatprep.subr.bf16.mxu0 0
        %845 = vmatpush1.bf16.msra.mxu0 %v807
        %846 = vmatprep.subr.bf16.mxu0 0
        %847 = vmatpush1.bf16.msra.mxu0 %v806
        %848 = vmatprep.subr.bf16.mxu0 0
        %849 = vmatpush1.bf16.msra.mxu0 %v805
        %850 = vmatprep.subr.bf16.mxu0 0
        %851 = vmatpush1.bf16.msra.mxu0 %v804
        %852 = vmatprep.subr.bf16.mxu0 0
        %853 = vmatpush2.bf16.msra.mxu0 %v819
        %854 = vmatprep.subr.bf16.mxu0 0
        %855 = vmatpush2.bf16.msra.mxu0 %v818
        %856 = vmatprep.subr.bf16.mxu0 0
        %857 = vmatpush2.bf16.msra.mxu0 %v817
        %858 = vmatprep.subr.bf16.mxu0 0
        %859 = vmatpush2.bf16.msra.mxu0 %v816
        %860 = vmatprep.subr.bf16.mxu0 0
        %861 = vmatpush2.bf16.msra.mxu0 %v815
        %862 = vmatprep.subr.bf16.mxu0 0
        %863 = vmatpush2.bf16.msra.mxu0 %v814
        %864 = vmatprep.subr.bf16.mxu0 0
        %865 = vmatpush2.bf16.msra.mxu0 %v813
        %866 = vmatprep.subr.bf16.mxu0 0
        %867 = vmatpush2.bf16.msra.mxu0 %v812
        %868 = vmatprep.mubr.bf16.mxu0 %v700
        %869 = vmatmul.mubr.bf16.gmra.mxu0 %v699
        %v870 = vpop.f32.mrf.mxu0
        %v871 = vadd.f32 %v738, %v870
        %v872 = vpop.f32.mrf.mxu0
        %v873 = vpop.f32.mrf.mxu0
        %v874 = vadd.f32 %v738, %v873
        %v875 = vpop.f32.mrf.mxu0
        %876 = vdwg.mxu0
        %877 = vmax.xlane.f32.xlu0 %v871
        %v878 = vpop.xlane.xlu0 %877
        %879 = vmax.xlane.f32.xlu0 %v874
        %v880 = vpop.xlane.xlu0 %879
        %v881 = vsub.f32 %v871, %v878
        %v882 = vsub.f32 %v874, %v880
        %v883 = vmul.f32 %v881, 1.442695
        %v884 = vpow.pop %v883
        %v885 = vmul.f32 %v882, 1.442695
        %v886 = vpow.pop %v885
        %887 = vadd.xlane.f32.xlu0 %v884
        %v888 = vpop.xlane.xlu0 %887
        %889 = vadd.xlane.f32.xlu0 %v886
        %v890 = vpop.xlane.xlu0 %889
        %v891 = vlog2.pop %v888
        %v892 = vmul.f32 %v891, 0.6931472
        %v893 = vlog2.pop %v890
        %v894 = vmul.f32 %v893, 0.6931472
        %v895 = vsub.f32 %v881, %v892
        %v896 = vsub.f32 %v882, %v894
        %vm897 = vcmask 15360
        %898 = vst.msk [vmem:[%s364] sm:$0xff] %vm897, %v895
        %899 = vst.msk [vmem:[%s364 + $0x8] sm:$0xff] %vm897, %v896
        %s900 = sand.u32 %s224, 1
        %s901 = sand.u32 %s224, 1
        %s902 = smul.addr %s901, 16
        %s903 = scalar_lea.vmem [#allocation6], %s902
        // Predicated region
        $region65: #{_forward_impl.1} parent=55 // pred_check
          %p904 = pneg %p234
        $region66: #{_forward_impl.1} parent=55 // pred_check_branch
          %906 = sbr.rel (%p904) target = $region68
        $region67: #{_forward_impl.1} parent=55 // pred_region
          %s907 = smul.u32 2, %s22
          %s908 = ssub.s32 3, %s907
          %p909 = scmp.lt.s32.totalorder %s908, 2
          %s910 = scalar_select %p909, %s908, 2
          %s911 = smul.u32 128, %s910
          %p912 = scmp.ne.s32.totalorder 0, %s911
          %s913 = smul.addr %s907, 8
          %s914 = scalar_lea.vmem %s9, %s913
          // Predicated region
          $region69: #{_forward_impl.1} parent=67 // pred_check
            %p915 = pneg %p912
          $region70: #{_forward_impl.1} parent=67 // pred_check_branch
            %917 = sbr.rel (%p915) target = $region72
          $region71: #{_forward_impl.1} parent=67 // pred_region
            // Predicated region
            $region73: #{_forward_impl.1} parent=71 // pred_check
              _
            $region74: #{_forward_impl.1} parent=71 // pred_check_branch
              %919 = sbr.rel (0) target = $region76
            $region75: #{_forward_impl.1} parent=71 // pred_region
              // Predicated region
              $region95: #{_forward_impl.1} parent=75 // pred_check
                _
              $region96: #{_forward_impl.1} parent=75 // pred_check_branch
                %971 = sbr.rel (0) target = $region98
              $region97: #{_forward_impl.1} parent=75 // pred_region
                %s972 = sshrl.u32 %s910, 1
                // While loop
                $region99: #{_forward_impl.1} parent=97 // loop_pre_header
                  _
                $region100: #{_forward_impl.1} parent=97 // loop_header
                  %s974 = sphi 0, %s976
                  %p975 = scmp.ge.s32.totalorder %s974, %s972
                  %s979 = sphi 0, %s988
                  %s980 = sphi %s903, %s991
                  %s981 = sphi %s914, %s992
                $region101: #{_forward_impl.1} parent=97 // loop_header_branch
                  %978 = sbr.rel (%p975) target = $region105
                $region102: #{_forward_impl.1} parent=97 // loop_body
                  %v982 = vld [vmem:[%s980] sm:$0xff]
                  %983 = vst [vmem:[%s981] sm:$0xff] %v982
                  %v984 = vld [vmem:[%s980 + $0x8] sm:$0xff]
                  %985 = vst [vmem:[%s981 + $0x8] sm:$0xff] %v984
                  %s986 = sadd.s32 1, %s979
                  %p987 = scmp.ge.s32.totalorder %s986, %s972
                  %s988 = scalar_select %p987, 0, %s986
                  %s989 = smul.u32 %s988, 16
                  %s990 = smul.u32 %s988, 16
                  %s991 = scalar_lea.vmem %s903, %s989 [#allocation6]
                  %s992 = scalar_lea.vmem %s914, %s990
                $region103: #{_forward_impl.1} parent=97 // loop_footer
                  %s976 = sadd.s32 %s974, 1
                $region104: #{_forward_impl.1} parent=97 // loop_footer_branch
                  %973 = sbr.rel target = $region100
                $region105: #{_forward_impl.1} parent=97 // loop_exit
                  _
                %s993 = sshrl.u32 %s910, 1
                %s994 = sand.u32 %s910, 1
                %s995 = smul.u32 %s993, 2
                %s996 = smul.u32 8, %s995
                %s997 = scalar_lea.vmem %s903, %s996 [#allocation6]
                %s998 = smul.u32 8, %s995
                %s999 = scalar_lea.vmem %s914, %s998
                // While loop
                $region106: #{_forward_impl.1} parent=97 // loop_pre_header
                  _
                $region107: #{_forward_impl.1} parent=97 // loop_header
                  %s1001 = sphi 0, %s1003
                  %p1002 = scmp.ge.s32.totalorder %s1001, %s994
                  %s1006 = sphi 0, %s1013
                  %s1007 = sphi %s997, %s1016
                  %s1008 = sphi %s999, %s1017
                $region108: #{_forward_impl.1} parent=97 // loop_header_branch
                  %1005 = sbr.rel (%p1002) target = $region112
                $region109: #{_forward_impl.1} parent=97 // loop_body
                  %v1009 = vld [vmem:[%s1007] sm:$0xff]
                  %1010 = vst [vmem:[%s1008] sm:$0xff] %v1009
                  %s1011 = sadd.s32 1, %s1006
                  %p1012 = scmp.ge.s32.totalorder %s1011, %s994
                  %s1013 = scalar_select %p1012, 0, %s1011
                  %s1014 = smul.u32 %s1013, 8
                  %s1015 = smul.u32 %s1013, 8
                  %s1016 = scalar_lea.vmem %s997, %s1014 [#allocation6]
                  %s1017 = scalar_lea.vmem %s999, %s1015
                $region110: #{_forward_impl.1} parent=97 // loop_footer
                  %s1003 = sadd.s32 %s1001, 1
                $region111: #{_forward_impl.1} parent=97 // loop_footer_branch
                  %1000 = sbr.rel target = $region107
                $region112: #{_forward_impl.1} parent=97 // loop_exit
                  _
              $region98: #{_forward_impl.1} parent=75 // pred_fallthru
                _
              // Predicated region
              $region113: #{_forward_impl.1} parent=75 // pred_check
                _
              $region114: #{_forward_impl.1} parent=75 // pred_check_branch
                %1019 = sbr.rel target = $region116
              $region115: #{_forward_impl.1} parent=75 // pred_region
                _
              $region116: #{_forward_impl.1} parent=75 // pred_fallthru
                _
            $region76: #{_forward_impl.1} parent=71 // pred_fallthru
              _
            // Predicated region
            $region77: #{_forward_impl.1} parent=71 // pred_check
              _
            $region78: #{_forward_impl.1} parent=71 // pred_check_branch
              %921 = sbr.rel target = $region80
            $region79: #{_forward_impl.1} parent=71 // pred_region
              %s923 = ssub.s32 256, 1
              %s924 = sshrl.u32 %s910, 1
              // While loop
              $region81: #{_forward_impl.1} parent=79 // loop_pre_header
                _
              $region82: #{_forward_impl.1} parent=79 // loop_header
                %s926 = sphi 0, %s928
                %p927 = scmp.ge.s32.totalorder %s926, %s924
                %s931 = sphi 0, %s940
                %s932 = sphi %s903, %s943
                %s933 = sphi %s914, %s944
              $region83: #{_forward_impl.1} parent=79 // loop_header_branch
                %930 = sbr.rel (%p927) target = $region87
              $region84: #{_forward_impl.1} parent=79 // loop_body
                %v934 = vld [vmem:[%s932] sm:%s923]
                %935 = vst [vmem:[%s933] sm:%s923] %v934
                %v936 = vld [vmem:[%s932 + $0x8] sm:%s923]
                %937 = vst [vmem:[%s933 + $0x8] sm:%s923] %v936
                %s938 = sadd.s32 1, %s931
                %p939 = scmp.ge.s32.totalorder %s938, %s924
                %s940 = scalar_select %p939, 0, %s938
                %s941 = smul.u32 %s940, 16
                %s942 = smul.u32 %s940, 16
                %s943 = scalar_lea.vmem %s903, %s941 [#allocation6]
                %s944 = scalar_lea.vmem %s914, %s942
              $region85: #{_forward_impl.1} parent=79 // loop_footer
                %s928 = sadd.s32 %s926, 1
              $region86: #{_forward_impl.1} parent=79 // loop_footer_branch
                %925 = sbr.rel target = $region82
              $region87: #{_forward_impl.1} parent=79 // loop_exit
                _
              %s945 = sshrl.u32 %s910, 1
              %s946 = sand.u32 %s910, 1
              %s947 = smul.u32 %s945, 2
              %s948 = smul.u32 8, %s947
              %s949 = scalar_lea.vmem %s903, %s948 [#allocation6]
              %s950 = smul.u32 8, %s947
              %s951 = scalar_lea.vmem %s914, %s950
              // While loop
              $region88: #{_forward_impl.1} parent=79 // loop_pre_header
                _
              $region89: #{_forward_impl.1} parent=79 // loop_header
                %s953 = sphi 0, %s955
                %p954 = scmp.ge.s32.totalorder %s953, %s946
                %s958 = sphi 0, %s965
                %s959 = sphi %s949, %s968
                %s960 = sphi %s951, %s969
              $region90: #{_forward_impl.1} parent=79 // loop_header_branch
                %957 = sbr.rel (%p954) target = $region94
              $region91: #{_forward_impl.1} parent=79 // loop_body
                %v961 = vld [vmem:[%s959] sm:%s923]
                %962 = vst [vmem:[%s960] sm:%s923] %v961
                %s963 = sadd.s32 1, %s958
                %p964 = scmp.ge.s32.totalorder %s963, %s946
                %s965 = scalar_select %p964, 0, %s963
                %s966 = smul.u32 %s965, 8
                %s967 = smul.u32 %s965, 8
                %s968 = scalar_lea.vmem %s949, %s966 [#allocation6]
                %s969 = scalar_lea.vmem %s951, %s967
              $region92: #{_forward_impl.1} parent=79 // loop_footer
                %s955 = sadd.s32 %s953, 1
              $region93: #{_forward_impl.1} parent=79 // loop_footer_branch
                %952 = sbr.rel target = $region89
              $region94: #{_forward_impl.1} parent=79 // loop_exit
                _
            $region80: #{_forward_impl.1} parent=71 // pred_fallthru
              _
          $region72: #{_forward_impl.1} parent=67 // pred_fallthru
            _
          %1020 = vnop
        $region68: #{_forward_impl.1} parent=55 // pred_fallthru
          _
      $region56: #{_forward_impl.1} parent=5 // pred_fallthru
        _
      %p1021 = scmp.le.s32.totalorder 2, %s17
      // Predicated region
      $region117: #{_forward_impl.1} parent=5 // pred_check
        %p1022 = pneg %p1021
      $region118: #{_forward_impl.1} parent=5 // pred_check_branch
        %1024 = sbr.rel (%p1022) target = $region120
      $region119: #{_forward_impl.1} parent=5 // pred_region
        %s1025 = ssub.s32 %s17, 2
        // Predicated region
        $region121: #{_forward_impl.1} parent=119 // pred_check
          %p1026 = pneg %p240
        $region122: #{_forward_impl.1} parent=119 // pred_check_branch
          %1028 = sbr.rel (%p1026) target = $region124
        $region123: #{_forward_impl.1} parent=119 // pred_region
          %s1029 = sand.u32 %s225, 1
          %s1030 = sand.u32 %s225, 1
          %s1031 = smul.addr %s1030, 16
          %s1032 = scalar_lea.vmem [#allocation6], %s1031
        $region124: #{_forward_impl.1} parent=119 // pred_fallthru
          _
      $region120: #{_forward_impl.1} parent=5 // pred_fallthru
        _
    $region6: #{_forward_impl.1} parent=1 // loop_footer
      %s21 = sadd.s32 1, %s17
    $region7: #{_forward_impl.1} parent=1 // loop_footer_branch
      %16 = sbr.rel target = $region3
    $region8: #{_forward_impl.1} parent=1 // loop_exit
      _
    %1033 = vsyncpa [#allocation3], 1
    %s1034 = scalar_lea.sflag [#allocation3], 1
    %1035 = vsyncpa %s1034, 1
    %1036 = vsyncpa [#allocation5], 1

</llo_original>
